<compile_context>
chip_gen: v6e
topology: v6e:2x2x1
jax: 0.10.0
libtpu: 0.0.40
codegen_flags: <defaults>
</compile_context>

<pallas_src>
import jax
import jax.numpy as jnp
from jax import lax
from jax.experimental import pallas as pl
from jax.experimental.pallas import tpu as pltpu


def _make_maxmin_kernel(n, tn, td, ch, need_mask, simple):
    """Build the row-reduction kernel. All args are Python-static.

    Grid is (grid_d, grid_n): D tiles on the "parallel" axis, N tiles
    (the reduction) on the innermost "arbitrary" axis.
    """
    n_chunks = 0 if simple else tn // ch
    rem = (n % tn) if need_mask else 0          # rows valid in the last tile
    full_chunks_last = rem // ch
    tail = rem % ch

    def kernel(x_ref, diff_ref, max_acc, min_acc):
        i = pl.program_id(1)                    # N-tile index (reduction axis)
        nt = pl.num_programs(1)

        # ---- init running accumulators at the start of each D-tile sweep ----
        @pl.when(i == 0)
        def _init():
            max_acc[...] = jnp.full(max_acc.shape, -jnp.inf, max_acc.dtype)
            min_acc[...] = jnp.full(min_acc.shape, jnp.inf, min_acc.dtype)

        def accum_chunks(num_chunks):
            # Stream (ch, td) chunks from the ref; the carry spans several
            # vregs -> several independent VPU max/min chains, low vreg usage.
            c0 = x_ref[0:ch, :]
            cmax, cmin = c0, c0
            if num_chunks > 1:
                if num_chunks <= 8:
                    for s in range(1, num_chunks):      # short: static unroll
                        chunk = x_ref[s * ch:(s + 1) * ch, :]
                        cmax = jnp.maximum(cmax, chunk)
                        cmin = jnp.minimum(cmin, chunk)
                else:
                    def body(s, carry):
                        cm, cn = carry
                        off = pl.multiple_of(s * ch, ch)
                        chunk = x_ref[pl.ds(off, ch), :]
                        return (jnp.maximum(cm, chunk),
                                jnp.minimum(cn, chunk))
                    cmax, cmin = lax.fori_loop(1, num_chunks, body,
                                               (cmax, cmin), unroll=4)
            return cmax, cmin

        def merge(cmax, cmin):
            max_acc[...] = jnp.maximum(max_acc[...], cmax)
            min_acc[...] = jnp.minimum(min_acc[...], cmin)

        if simple:
            # Tiny input (N <= one chunk): one whole-tile reduce, no mask.
            x = x_ref[...]
            merge(jnp.max(x, axis=0, keepdims=True),
                  jnp.min(x, axis=0, keepdims=True))
        elif not need_mask:
            cmax, cmin = accum_chunks(n_chunks)
            merge(cmax, cmin)
        else:
            # Steady-state tiles: completely mask-free streaming path.
            @pl.when(i < nt - 1)
            def _full_tile():
                cmax, cmin = accum_chunks(n_chunks)
                merge(cmax, cmin)

            # Final partial tile: remainder is statically known -> mask only
            # the one tail chunk (small (ch, td) iota, not a full-tile one).
            @pl.when(i == nt - 1)
            def _last_tile():
                cmax = None
                cmin = None
                if full_chunks_last >= 1:
                    cmax, cmin = accum_chunks(full_chunks_last)
                if tail > 0:
                    off = full_chunks_last * ch
                    chunk = x_ref[off:off + ch, :]
                    ridx = lax.broadcasted_iota(jnp.int32, (ch, td), 0)
                    valid = ridx < tail
                    t_hi = jnp.where(valid, chunk,
                                     jnp.array(-jnp.inf, chunk.dtype))
                    t_lo = jnp.where(valid, chunk,
                                     jnp.array(jnp.inf, chunk.dtype))
                    if cmax is None:
                        cmax, cmin = t_hi, t_lo
                    else:
                        cmax = jnp.maximum(cmax, t_hi)
                        cmin = jnp.minimum(cmin, t_lo)
                merge(cmax, cmin)

        # ---- epilogue: one cross-sublane (XLU) reduce per D-tile ----
        @pl.when(i == nt - 1)
        def _finalize():
            max_row = jnp.max(max_acc[...], axis=0, keepdims=True)   # (1, td)
            min_row = jnp.min(min_acc[...], axis=0, keepdims=True)   # (1, td)
            diff = max_row.astype(jnp.float32) - min_row.astype(jnp.float32)
            diff_ref[...] = diff.astype(diff_ref.dtype)

    return kernel


def maxmin_aggregator(x, weight, bias, *, target_block_bytes=2 * 1024 * 1024):
    """x: (N, D); weight: (D,); bias: ().

    Returns (sigmoid(w . (max(x,0)-min(x,0)) + b) shaped (1,), diff shaped (D,)),
    matching MaxminAggregator.forward.
    """
    n, d = x.shape
    assert weight.shape == (d,)
    assert jnp.issubdtype(x.dtype, jnp.floating), (
        "maxmin_aggregator needs a floating dtype (uses +-inf padding mask)")

    itemsize = jnp.dtype(x.dtype).itemsize
    slab = 8 * max(1, 4 // itemsize)         # vreg rows: 8 f32 / 16 bf16 / 32 int8

    # ---- D (lane) tiling: "parallel" axis -> megacore sharding on v7x ----
    td = d
    if d > 512 and d % 128 == 0:
        for cand in (512, 384, 256, 128):
            if d % cand == 0:
                td = cand
                break
    grid_d = d // td

    # ---- chunk: ~16 KiB (a few vregs) per elementwise max/min step ----
    ch = max(slab, ((16 * 1024) // (td * itemsize) // slab) * slab)

    # ---- N (row) tiling: byte-budgeted input block (~target_block_bytes) ----
    if n <= ch:
        tn = n
        simple = True
    else:
        rows = max(ch, (target_block_bytes // (td * itemsize) // ch) * ch)
        tn = min(rows, (n // ch) * ch)       # multiple of ch, <= rows budget
        simple = False
    grid_n = pl.cdiv(n, tn)
    need_mask = (n % tn) != 0
    acc_rows = 1 if simple else ch

    block_bytes = tn * td * itemsize
    # Explicit scoped-VMEM budget (portable to v7x's 64 MiB physical VMEM):
    # 2x double-buffered input block + accumulators + outputs, with headroom.
    vmem_limit = int(min(max(8 * block_bytes, 4 << 20), 32 << 20))

    kernel = _make_maxmin_kernel(n, tn, td, ch, need_mask, simple)

    diff2d = pl.pallas_call(
        kernel,
        out_shape=jax.ShapeDtypeStruct((1, d), x.dtype),
        grid=(grid_d, grid_n),
        in_specs=[
            # x: rows tiled on the reduction axis, columns on the parallel axis.
            # (Default double-buffering; pipeline_mode=pl.Buffered(3) is the
            #  sweep knob if a profile ever shows exposed DMA on short tiles.)
            pl.BlockSpec((tn, td), lambda j, i: (i, j)),
        ],
        out_specs=pl.BlockSpec((1, td), lambda j, i: (0, j)),
        scratch_shapes=[
            pltpu.VMEM((acc_rows, td), x.dtype),   # running max per D-tile
            pltpu.VMEM((acc_rows, td), x.dtype),   # running min per D-tile
        ],
        compiler_params=pltpu.CompilerParams(
            dimension_semantics=("parallel", "arbitrary"),
            vmem_limit_bytes=vmem_limit,
        ),
    )(x)

    diff = diff2d.reshape(d)
    # Tiny O(D) classifier head in the wrapper (per perf review) so the
    # D-parallel grid axis never needs a cross-core combine.
    logit = jnp.dot(diff.astype(jnp.float32), weight.astype(jnp.float32))
    prob = jax.nn.sigmoid(logit + bias.astype(jnp.float32)).reshape(1)
    return prob, diff


def _reference(x, weight, bias):
    diff = jnp.max(x, axis=0) - jnp.min(x, axis=0)
    prob = jax.nn.sigmoid(diff @ weight + bias).reshape(1)
    return prob, diff


if __name__ == "__main__":
    key = jax.random.PRNGKey(0)
    kx, kw, kb, kx2, kx3, kw3 = jax.random.split(key, 6)

    # Small shapes implied by the module: 8 vertices, dim_vertex = 32.
    n_vertices, dim_vertex = 8, 32
    x = jax.random.normal(kx, (n_vertices, dim_vertex), dtype=jnp.float32)
    bound = 1.0 / (dim_vertex ** 0.5)
    weight = jax.random.uniform(kw, (dim_vertex,), jnp.float32, -bound, bound)
    bias = jax.random.uniform(kb, (), jnp.float32, -bound, bound)

    prob, diff = maxmin_aggregator(x, weight, bias)
    jax.block_until_ready((prob, diff))
    prob_ref, diff_ref = _reference(x, weight, bias)
    assert jnp.allclose(diff, diff_ref, atol=1e-5), "diff mismatch (small)"
    assert jnp.allclose(prob, prob_ref, atol=1e-5), "prob mismatch (small)"

    # Tiled + masked row path: N not a multiple of the row tile.
    n2, d2 = 300, 128
    x2 = jax.random.normal(kx2, (n2, d2), dtype=jnp.float32)
    w2 = jax.random.uniform(kw, (d2,), jnp.float32, -0.1, 0.1)
    b2 = jnp.array(0.05, dtype=jnp.float32)
    prob2, diff2 = maxmin_aggregator(x2, w2, b2)
    jax.block_until_ready((prob2, diff2))
    prob2_ref, diff2_ref = _reference(x2, w2, b2)
    assert jnp.allclose(diff2, diff2_ref, atol=1e-5), "diff mismatch (tiled)"
    assert jnp.allclose(prob2, prob2_ref, atol=1e-5), "prob mismatch (tiled)"

    # D-tiled ("parallel" megacore axis) + long streamed fori_loop path.
    n3, d3 = 1000, 1024
    x3 = jax.random.normal(kx3, (n3, d3), dtype=jnp.float32)
    w3 = jax.random.uniform(kw3, (d3,), jnp.float32, -0.05, 0.05)
    b3 = jnp.array(-0.1, dtype=jnp.float32)
    prob3, diff3 = maxmin_aggregator(x3, w3, b3)
    jax.block_until_ready((prob3, diff3))
    prob3_ref, diff3_ref = _reference(x3, w3, b3)
    assert jnp.allclose(diff3, diff3_ref, atol=1e-5), "diff mismatch (D-tiled)"
    assert jnp.allclose(prob3, prob3_ref, atol=1e-5), "prob mismatch (D-tiled)"

    print("KERNEL_OK")
</pallas_src>

<mosaic_0001>
module attributes {stable_mosaic.version = 11 : i64} {
  func.func @kernel(%arg0: i32, %arg1: i32, %arg2: memref<8x32xf32, #tpu.memory_space<vmem>>, %arg3: memref<1x32xf32, #tpu.memory_space<vmem>>, %arg4: memref<1x32xf32, #tpu.memory_space<vmem>>, %arg5: memref<1x32xf32, #tpu.memory_space<vmem>>) attributes {dimension_semantics = [#tpu.dimension_semantics<parallel>, #tpu.dimension_semantics<arbitrary>], iteration_bounds = array<i64: 1, 1>, scalar_prefetch = 0 : i64, scratch_operands = 2 : i64, tpu.core_type = #tpu.core_type<tc>, window_params = [{transform_indices = @transform_0, window_bounds = array<i64: 8, 32>}, {transform_indices = @transform_1, window_bounds = array<i64: 1, 32>}]} {
    %c0_i32 = arith.constant 0 : i32
    %0 = arith.cmpi eq, %arg1, %c0_i32 : i32
    %1 = arith.extui %0 : i1 to i32
    %c0_i32_0 = arith.constant 0 : i32
    %2 = arith.cmpi ne, %1, %c0_i32_0 : i32
    scf.if %2 {
      %cst_13 = arith.constant 0xFF800000 : f32
      %17 = vector.broadcast %cst_13 : f32 to vector<1x32xf32>
      %c0_14 = arith.constant 0 : index
      %c0_15 = arith.constant 0 : index
      %18 = vector.load %arg4[%c0_14, %c0_15] : memref<1x32xf32, #tpu.memory_space<vmem>>, vector<1x32xf32>
      tpu.vector_store %arg4[%c0_14, %c0_15], %17 {strides = array<i32>} : memref<1x32xf32, #tpu.memory_space<vmem>>, vector<1x32xf32>,
      %cst_16 = arith.constant 0x7F800000 : f32
      %19 = vector.broadcast %cst_16 : f32 to vector<1x32xf32>
      %c0_17 = arith.constant 0 : index
      %c0_18 = arith.constant 0 : index
      %20 = vector.load %arg5[%c0_17, %c0_18] : memref<1x32xf32, #tpu.memory_space<vmem>>, vector<1x32xf32>
      tpu.vector_store %arg5[%c0_17, %c0_18], %19 {strides = array<i32>} : memref<1x32xf32, #tpu.memory_space<vmem>>, vector<1x32xf32>,
    } else {
    }
    %c0 = arith.constant 0 : index
    %c0_1 = arith.constant 0 : index
    %3 = vector.load %arg2[%c0, %c0_1] : memref<8x32xf32, #tpu.memory_space<vmem>>, vector<8x32xf32>
    %cst = arith.constant dense<0xFF800000> : vector<32xf32>
    %4 = vector.multi_reduction <maximumf>, %3, %cst [0] : vector<8x32xf32> to vector<32xf32>
    %5 = vector.shape_cast %4 : vector<32xf32> to vector<1x32xf32>
    %cst_2 = arith.constant dense<0x7F800000> : vector<32xf32>
    %6 = vector.multi_reduction <minimumf>, %3, %cst_2 [0] : vector<8x32xf32> to vector<32xf32>
    %7 = vector.shape_cast %6 : vector<32xf32> to vector<1x32xf32>
    %c0_3 = arith.constant 0 : index
    %c0_4 = arith.constant 0 : index
    %8 = vector.load %arg4[%c0_3, %c0_4] : memref<1x32xf32, #tpu.memory_space<vmem>>, vector<1x32xf32>
    %9 = arith.maximumf %8, %5 : vector<1x32xf32>
    %c0_5 = arith.constant 0 : index
    %c0_6 = arith.constant 0 : index
    %10 = vector.load %arg4[%c0_5, %c0_6] : memref<1x32xf32, #tpu.memory_space<vmem>>, vector<1x32xf32>
    tpu.vector_store %arg4[%c0_5, %c0_6], %9 {strides = array<i32>} : memref<1x32xf32, #tpu.memory_space<vmem>>, vector<1x32xf32>,
    %c0_7 = arith.constant 0 : index
    %c0_8 = arith.constant 0 : index
    %11 = vector.load %arg5[%c0_7, %c0_8] : memref<1x32xf32, #tpu.memory_space<vmem>>, vector<1x32xf32>
    %12 = arith.minimumf %11, %7 : vector<1x32xf32>
    %c0_9 = arith.constant 0 : index
    %c0_10 = arith.constant 0 : index
    %13 = vector.load %arg5[%c0_9, %c0_10] : memref<1x32xf32, #tpu.memory_space<vmem>>, vector<1x32xf32>
    tpu.vector_store %arg5[%c0_9, %c0_10], %12 {strides = array<i32>} : memref<1x32xf32, #tpu.memory_space<vmem>>, vector<1x32xf32>,
    %c0_i32_11 = arith.constant 0 : i32
    %14 = arith.cmpi eq, %arg1, %c0_i32_11 : i32
    %15 = arith.extui %14 : i1 to i32
    %c0_i32_12 = arith.constant 0 : i32
    %16 = arith.cmpi ne, %15, %c0_i32_12 : i32
    scf.if %16 {
      %c0_13 = arith.constant 0 : index
      %c0_14 = arith.constant 0 : index
      %17 = vector.load %arg4[%c0_13, %c0_14] : memref<1x32xf32, #tpu.memory_space<vmem>>, vector<1x32xf32>
      %cst_15 = arith.constant dense<0xFF800000> : vector<32xf32>
      %18 = vector.multi_reduction <maximumf>, %17, %cst_15 [0] : vector<1x32xf32> to vector<32xf32>
      %19 = vector.shape_cast %18 : vector<32xf32> to vector<1x32xf32>
      %c0_16 = arith.constant 0 : index
      %c0_17 = arith.constant 0 : index
      %20 = vector.load %arg5[%c0_16, %c0_17] : memref<1x32xf32, #tpu.memory_space<vmem>>, vector<1x32xf32>
      %cst_18 = arith.constant dense<0x7F800000> : vector<32xf32>
      %21 = vector.multi_reduction <minimumf>, %20, %cst_18 [0] : vector<1x32xf32> to vector<32xf32>
      %22 = vector.shape_cast %21 : vector<32xf32> to vector<1x32xf32>
      %23 = arith.subf %19, %22 : vector<1x32xf32>
      %c0_19 = arith.constant 0 : index
      %c0_20 = arith.constant 0 : index
      %24 = vector.load %arg3[%c0_19, %c0_20] : memref<1x32xf32, #tpu.memory_space<vmem>>, vector<1x32xf32>
      tpu.vector_store %arg3[%c0_19, %c0_20], %23 {strides = array<i32>} : memref<1x32xf32, #tpu.memory_space<vmem>>, vector<1x32xf32>,
    } else {
    }
    return
  }
  func.func @transform_0(%arg0: i32, %arg1: i32) -> (i32, i32) {
    %c0_i32 = arith.constant 0 : i32
    return %arg1, %arg0 : i32, i32
  }
  func.func @transform_1(%arg0: i32, %arg1: i32) -> (i32, i32) {
    %c0_i32 = arith.constant 0 : i32
    %c0_i32_0 = arith.constant 0 : i32
    return %c0_i32, %arg0 : i32, i32
  }
}

</mosaic_0001>

<llo_original>
// kernel: tpu_custom_call.1
$region0: #{tpu_custom_call.1}
  #allocation0 [shape = 'u32[]', space=smem, size = 0x4, offset = 0x4, fixed_abs, tag = 'smem constant byte address 0x4 - core index']
  #allocation1 [shape = 'u32[144,128]{1,0:T(1,128)}', space=vmem, size = 0x12000, scoped, tag = 'internal scratch']
  #allocation2 [shape = 'f32[1,32]{1,0:T(1,128)}', space=vmem, size = 0x200, scoped, tag = 'scratch operand']
  #allocation3 [shape = 'f32[1,32]{1,0:T(1,128)}', space=vmem, size = 0x200, scoped, tag = 'scratch operand']
  %s0 = inlined_call_operand.hbm [shape: f32[8,32], index: 0, kind: input, shape index: {}]
  %s1 = inlined_call_operand.hbm [shape: f32[1,32], index: 1, kind: output, shape index: {}]
  %s2 = sld [smem:[#allocation0]]
  $region26: #{tpu_custom_call.1} parent=0
    _
  %s4 = ssub.s32 1, %s2
  %s5 = scalar_select 0, %s4, %s2
  $region1: #{tpu_custom_call.1} parent=0
    #allocation4 [shape = 'u8[4096]{0}', space=vmem, size = 0x1000, scoped, tag = 'input window, operand 0, single buffered']
    #allocation5 [shape = 's32[1]{0}', space=sflag, size = 0x4, scoped, tag = 'scoped memory for tpu_custom_call.1']
    #allocation6 [shape = 's32[1]{0}', space=sflag, size = 0x4, scoped, tag = 'scoped memory for tpu_custom_call.1']
    #allocation7 [shape = 'u8[512]{0}', space=vmem, size = 0x400, scoped, tag = 'output window, operand 0, single buffered']
    %6 = vsyncpa [#allocation5], 0
    %7 = vsyncpa [#allocation6], 0
    // Predicated region
    $region2: #{tpu_custom_call.1} parent=1 // pred_check
      _
    $region3: #{tpu_custom_call.1} parent=1 // pred_check_branch
      %9 = sbr.rel (0) target = $region5
    $region4: #{tpu_custom_call.1} parent=1 // pred_region
      %s11 = ssub.s32 128, 128
      %12 = vsyncadd [#allocation5], %s11
      %s14 = sshll.u32 [#allocation4], 4
      %s15 = int_to_ptr.vmem [resolvable:$true] %s14
      %17 = dma.hbm_to_vmem [thread:$0]  %s0, 128, %s15, [#allocation5]
    $region5: #{tpu_custom_call.1} parent=1 // pred_fallthru
      _
    // Predicated region
    $region6: #{tpu_custom_call.1} parent=1 // pred_check
      _
    $region7: #{tpu_custom_call.1} parent=1 // pred_check_branch
      %19 = sbr.rel (0) target = $region9
    $region8: #{tpu_custom_call.1} parent=1 // pred_region
      %20 = dma.done [#allocation5], 128
    $region9: #{tpu_custom_call.1} parent=1 // pred_fallthru
      _
    %p21 = scmp.eq.s32.totalorder 0, 0
    // Predicated region
    $region10: #{tpu_custom_call.1} parent=1 // pred_check
      %p22 = pneg %p21
    $region11: #{tpu_custom_call.1} parent=1 // pred_check_branch
      %24 = sbr.rel (%p22) target = $region13
    $region12: #{tpu_custom_call.1} parent=1 // pred_region
      %vm25 = vcmask 253952
      %26 = vst.msk [vmem:[#allocation2] sm:$0x1] %vm25, -inf
      %27 = vst.msk [vmem:[#allocation3] sm:$0x1] %vm25, inf
    $region13: #{tpu_custom_call.1} parent=1 // pred_fallthru
      _
    %v28 = vld [vmem:[#allocation4] sm:$0xff]
    %vm29 = vcmask 261120
    %v30 = vsel %vm29, %v28, -inf
    %v31 = vrot.slane %v30, 4
    %v32 = vmax.f32 %v30, %v31
    %v33 = vrot.slane %v32, 2
    %v34 = vmax.f32 %v32, %v33
    %v35 = vrot.slane %v34, 1
    %v36 = vmax.f32 %v34, %v35
    %v37 = vsel %vm29, %v28, inf
    %v38 = vrot.slane %v37, 4
    %v39 = vmin.f32 %v37, %v38
    %v40 = vrot.slane %v39, 2
    %v41 = vmin.f32 %v39, %v40
    %v42 = vrot.slane %v41, 1
    %v43 = vmin.f32 %v41, %v42
    %v44 = vld [vmem:[#allocation2] sm:$0x1]
    %v45 = vmax.f32 %v44, %v36
    %vm46 = vcmask 253952
    %47 = vst.msk [vmem:[#allocation2] sm:$0x1] %vm46, %v45
    %v48 = vld [vmem:[#allocation3] sm:$0x1]
    %v49 = vmin.f32 %v48, %v43
    %50 = vst.msk [vmem:[#allocation3] sm:$0x1] %vm46, %v49
    // Predicated region
    $region14: #{tpu_custom_call.1} parent=1 // pred_check
      %p51 = pneg %p21
    $region15: #{tpu_custom_call.1} parent=1 // pred_check_branch
      %53 = sbr.rel (%p51) target = $region17
    $region16: #{tpu_custom_call.1} parent=1 // pred_region
      %v54 = vld [vmem:[#allocation2] sm:$0x1]
      %v55 = vld [vmem:[#allocation3] sm:$0x1]
      %v56 = vsub.f32 %v54, %v55
      %57 = vst.msk [vmem:[#allocation7] sm:$0x1] %vm46, %v56
    $region17: #{tpu_custom_call.1} parent=1 // pred_fallthru
      _
    // Predicated region
    $region18: #{tpu_custom_call.1} parent=1 // pred_check
      _
    $region19: #{tpu_custom_call.1} parent=1 // pred_check_branch
      %59 = sbr.rel (0) target = $region21
    $region20: #{tpu_custom_call.1} parent=1 // pred_region
      %s61 = ssub.s32 16, 16
      %62 = vsyncadd [#allocation6], %s61
      %s64 = sshll.u32 [#allocation7], 4
      %s65 = int_to_ptr.vmem [resolvable:$true] %s64
      %67 = dma.vmem_to_hbm [thread:$0]  %s65, 16, %s1, [#allocation6]
    $region21: #{tpu_custom_call.1} parent=1 // pred_fallthru
      _
    // Predicated region
    $region22: #{tpu_custom_call.1} parent=1 // pred_check
      _
    $region23: #{tpu_custom_call.1} parent=1 // pred_check_branch
      %69 = sbr.rel (0) target = $region25
    $region24: #{tpu_custom_call.1} parent=1 // pred_region
      %70 = dma.done [#allocation6], 16
    $region25: #{tpu_custom_call.1} parent=1 // pred_fallthru
      _
    %71 = vsyncpa [#allocation5], 1
    %72 = vsyncpa [#allocation6], 1

</llo_original>
